<compile_context>
chip_gen: v6e
topology: v6e:2x2x1
jax: 0.10.0
libtpu: 0.0.40
codegen_flags: <defaults>
</compile_context>

<pallas_src>
import functools
import math

import jax
import jax.numpy as jnp
from jax.experimental import pallas as pl
from jax.experimental.pallas import tpu as pltpu


# >= 2 grid steps per TensorCore on v7x (2 TCs / chip); also keeps the software
# pipeline's prologue/epilogue from dominating.
_MIN_GRID_STEPS = 4


@functools.lru_cache(maxsize=1)
def _budgets():
    """Returns (per-block HBM byte target for one array, scoped vmem_limit_bytes)."""
    vmem_cap = None
    try:
        vmem_cap = getattr(pltpu.get_tpu_info(), "vmem_capacity_bytes", None)
    except Exception:
        vmem_cap = None
    if vmem_cap is not None and vmem_cap >= 96 * 1024 * 1024:
        # v5e / v6e: 128 MiB physical VMEM -> big blocks, generous scoped limit.
        return 8 * 1024 * 1024, 96 * 1024 * 1024
    # v7x (64 MiB per-TC VMEM) or unknown: conservative so the same kernel always fits.
    return 4 * 1024 * 1024, 48 * 1024 * 1024


def _compiler_params(n_axes, vmem_limit):
    return pltpu.CompilerParams(
        dimension_semantics=("parallel",) * n_axes,
        vmem_limit_bytes=vmem_limit,
    )


def _cost_estimate(numel, c, itemsize):
    # ~7 VPU ops/element, one rsqrt per normalized row, read+write of the tensor.
    return pl.CostEstimate(
        flops=7 * numel,
        transcendentals=max(1, numel // max(1, c)),
        bytes_accessed=2 * numel * itemsize,
    )


def _sublane_unit(dtype):
    itemsize = jnp.dtype(dtype).itemsize
    return 8 if itemsize >= 4 else (32 // itemsize)


def _pick_lane_tile(total_lanes, bytes_per_lane, target_bytes, outer_steps):
    """Lane-axis tile: a multiple of 128 (or the full extent), sized by the real HBM
    bytes it moves, then halved until the total grid has >= _MIN_GRID_STEPS steps."""
    if total_lanes <= 128:
        return total_lanes
    budget = max(128, (target_bytes // max(1, bytes_per_lane)) // 128 * 128)
    tile = max(128, min(budget, (total_lanes // 128) * 128))
    while (outer_steps * pl.cdiv(total_lanes, tile) < _MIN_GRID_STEPS
           and tile >= 256 and (tile // 2) % 128 == 0):
        tile //= 2
    return tile


def _pick_row_tile(total_rows, bytes_per_row, unit, target_bytes):
    """Sublane-axis tile: a multiple of `unit` (or the full extent), sized by real HBM
    bytes, then halved until the grid has >= _MIN_GRID_STEPS steps."""
    if total_rows <= unit:
        return total_rows
    budget = max(unit, (target_bytes // max(1, bytes_per_row)) // unit * unit)
    tile = max(unit, min(budget, (total_rows // unit) * unit))
    while (pl.cdiv(total_rows, tile) < _MIN_GRID_STEPS
           and tile >= 2 * unit and (tile // 2) % unit == 0):
        tile //= 2
    return tile


# --------------------- channels_first: reduce over C on sublanes ---------------------

def _ln_cf_kernel(x_ref, w_ref, b_ref, o_ref, *, eps, inv_c):
    # x_ref: (1, C, tile_hw)   w_ref / b_ref: (1, C, 1), already float32.
    # Two-pass stats: mean, then mean((x-mean)^2) — matches torch exactly and avoids
    # the single-pass cancellation; the extra VPU pass is hidden by the DMAs.
    x = x_ref[...].astype(jnp.float32)
    mean = jnp.sum(x, axis=1, keepdims=True) * inv_c
    d = x - mean
    var = jnp.sum(d * d, axis=1, keepdims=True) * inv_c
    y = d * jax.lax.rsqrt(var + eps)
    o_ref[...] = (w_ref[...] * y + b_ref[...]).astype(o_ref.dtype)


def _layernorm_channels_first(x, weight, bias, eps):
    B, C, H, W = x.shape
    HW = H * W
    x3 = x.reshape(B, C, HW)                   # free view: one (C, H*W) slab per image
    itemsize = jnp.dtype(x.dtype).itemsize
    block_target, vmem_limit = _budgets()

    # NOTE: C < 8 pads the sublane axis (up to 8/C extra VPU work). Memory-bound cases
    # hide it; typical ConvNeXt C (96..768) is unaffected.
    tile_hw = _pick_lane_tile(HW, C * itemsize, block_target, outer_steps=B)
    n_hw = pl.cdiv(HW, tile_hw)

    w3 = weight.astype(jnp.float32).reshape(1, C, 1)
    b3 = bias.astype(jnp.float32).reshape(1, C, 1)

    kernel = functools.partial(_ln_cf_kernel, eps=eps, inv_c=1.0 / C)
    out = pl.pallas_call(
        kernel,
        out_shape=jax.ShapeDtypeStruct((B, C, HW), x.dtype),
        grid_spec=pltpu.PrefetchScalarGridSpec(
            num_scalar_prefetch=0,
            grid=(B, n_hw),
            in_specs=[
                pl.BlockSpec((1, C, tile_hw), lambda b, s: (b, 0, s)),
                pl.BlockSpec((1, C, 1), lambda b, s: (0, 0, 0)),
                pl.BlockSpec((1, C, 1), lambda b, s: (0, 0, 0)),
            ],
            out_specs=pl.BlockSpec((1, C, tile_hw), lambda b, s: (b, 0, s)),
        ),
        compiler_params=_compiler_params(2, vmem_limit),
        cost_estimate=_cost_estimate(B * C * HW, C, itemsize),
    )(x3, w3, b3)
    return out.reshape(B, C, H, W)


# ---------------------- channels_last: reduce over C on lanes -----------------------

def _ln_rows_kernel(x_ref, w_ref, b_ref, o_ref, *, eps, inv_c):
    # x_ref: (tile_n, C)   w_ref / b_ref: (1, C), already float32.
    x = x_ref[...].astype(jnp.float32)
    mean = jnp.sum(x, axis=-1, keepdims=True) * inv_c
    d = x - mean
    var = jnp.sum(d * d, axis=-1, keepdims=True) * inv_c
    y = d * jax.lax.rsqrt(var + eps)
    o_ref[...] = (w_ref[...] * y + b_ref[...]).astype(o_ref.dtype)


def _ln_rows_folded_kernel(x_ref, w_ref, b_ref, seg_ref, segt_ref, o_ref, *, eps, inv_c):
    # x_ref: (tile_m, g*C) with g original rows folded into the lane axis so loads and
    # stores are lane-dense even when C % 128 != 0. Per-original-row stats are segment
    # sums computed on the otherwise-idle MXU: seg_ref is the (g*C, g) 0/1 segment
    # indicator, segt_ref its (g, g*C) transpose (broadcasts stats back per segment).
    x = x_ref[...].astype(jnp.float32)
    seg = seg_ref[...]
    segt = segt_ref[...]
    mean = jnp.dot(x, seg, preferred_element_type=jnp.float32) * inv_c         # (m, g)
    d = x - jnp.dot(mean, segt, preferred_element_type=jnp.float32)            # (m, g*C)
    var = jnp.dot(d * d, seg, preferred_element_type=jnp.float32) * inv_c      # (m, g)
    inv = jnp.dot(jax.lax.rsqrt(var + eps), segt, preferred_element_type=jnp.float32)
    o_ref[...] = (w_ref[...] * (d * inv) + b_ref[...]).astype(o_ref.dtype)


def _layernorm_rows_plain(x2d, weight, bias, eps):
    N, C = x2d.shape
    itemsize = jnp.dtype(x2d.dtype).itemsize
    block_target, vmem_limit = _budgets()
    unit = _sublane_unit(x2d.dtype)
    tile_n = _pick_row_tile(N, C * itemsize, unit, block_target)
    n_rows = pl.cdiv(N, tile_n)

    w2 = weight.astype(jnp.float32).reshape(1, C)
    b2 = bias.astype(jnp.float32).reshape(1, C)

    kernel = functools.partial(_ln_rows_kernel, eps=eps, inv_c=1.0 / C)
    return pl.pallas_call(
        kernel,
        out_shape=jax.ShapeDtypeStruct((N, C), x2d.dtype),
        grid_spec=pltpu.PrefetchScalarGridSpec(
            num_scalar_prefetch=0,
            grid=(n_rows,),
            in_specs=[
                pl.BlockSpec((tile_n, C), lambda i: (i, 0)),
                pl.BlockSpec((1, C), lambda i: (0, 0)),
                pl.BlockSpec((1, C), lambda i: (0, 0)),
            ],
            out_specs=pl.BlockSpec((tile_n, C), lambda i: (i, 0)),
        ),
        compiler_params=_compiler_params(1, vmem_limit),
        cost_estimate=_cost_estimate(N * C, C, itemsize),
    )(x2d, w2, b2)


def _layernorm_rows_folded(x2d, weight, bias, eps, g):
    N, C = x2d.shape
    gc = g * C
    nf = N // g
    xf = x2d.reshape(nf, gc)                   # free view: last axis stays contiguous

    itemsize = jnp.dtype(x2d.dtype).itemsize
    block_target, vmem_limit = _budgets()
    unit = _sublane_unit(x2d.dtype)
    tile_m = _pick_row_tile(nf, gc * itemsize, unit, block_target)
    n_rows = pl.cdiv(nf, tile_m)

    w_t = jnp.tile(weight.astype(jnp.float32), g).reshape(1, gc)
    b_t = jnp.tile(bias.astype(jnp.float32), g).reshape(1, gc)
    seg = (jnp.arange(gc, dtype=jnp.int32)[:, None] // C
           == jnp.arange(g, dtype=jnp.int32)[None, :]).astype(jnp.float32)     # (g*C, g)
    segt = jnp.transpose(seg)                                                  # (g, g*C)

    kernel = functools.partial(_ln_rows_folded_kernel, eps=eps, inv_c=1.0 / C)
    out = pl.pallas_call(
        kernel,
        out_shape=jax.ShapeDtypeStruct((nf, gc), x2d.dtype),
        grid_spec=pltpu.PrefetchScalarGridSpec(
            num_scalar_prefetch=0,
            grid=(n_rows,),
            in_specs=[
                pl.BlockSpec((tile_m, gc), lambda i: (i, 0)),
                pl.BlockSpec((1, gc), lambda i: (0, 0)),
                pl.BlockSpec((1, gc), lambda i: (0, 0)),
                pl.BlockSpec((gc, g), lambda i: (0, 0)),
                pl.BlockSpec((g, gc), lambda i: (0, 0)),
            ],
            out_specs=pl.BlockSpec((tile_m, gc), lambda i: (i, 0)),
        ),
        compiler_params=_compiler_params(1, vmem_limit),
        cost_estimate=_cost_estimate(N * C, C, itemsize),
    )(xf, w_t, b_t, seg, segt)
    return out.reshape(N, C)


def _layernorm_channels_last(x2d, weight, bias, eps):
    N, C = x2d.shape
    if C % 128 != 0:
        # Otherwise the (tile_n, C) output block is lane-sparse (masked vst.msk stores
        # for ConvNeXt C=96/192 or tiny C). Fold g rows into the lane axis so every
        # store is 128-dense; fall back to the plain path when folding is not clean.
        g = 128 // math.gcd(C, 128)
        seg_bytes = (g * C) * g * 4
        if N % g == 0 and 2 <= g <= 64 and seg_bytes <= (1 << 20):
            return _layernorm_rows_folded(x2d, weight, bias, eps, g)
    return _layernorm_rows_plain(x2d, weight, bias, eps)


# ------------------------------------ module -----------------------------------------

class LayerNormPallas:
    """Mirrors the PyTorch LayerNorm module (channels_first / channels_last)."""

    def __init__(self, normalized_shape, eps=1e-6, data_format="channels_first"):
        if data_format not in ("channels_last", "channels_first"):
            raise NotImplementedError
        self.weight = jnp.ones((normalized_shape,), dtype=jnp.float32)
        self.bias = jnp.zeros((normalized_shape,), dtype=jnp.float32)
        self.eps = eps
        self.data_format = data_format
        self.normalized_shape = (normalized_shape,)

    def __call__(self, x):
        if self.data_format == "channels_last":
            # x: (..., C); normalize over the last dim. The flatten is a free view.
            C = x.shape[-1]
            lead = x.shape[:-1]
            n = 1
            for d in lead:
                n *= d
            out = _layernorm_channels_last(x.reshape(n, C), self.weight, self.bias, self.eps)
            return out.reshape(*lead, C)
        # x: (B, C, H, W); normalize over the channel dim with no wrapper transposes.
        return _layernorm_channels_first(x, self.weight, self.bias, self.eps)


def _reference_channels_first(x, weight, bias, eps):
    u = jnp.mean(x, axis=1, keepdims=True)
    s = jnp.mean((x - u) ** 2, axis=1, keepdims=True)
    xn = (x - u) / jnp.sqrt(s + eps)
    return weight[None, :, None, None] * xn + bias[None, :, None, None]


if __name__ == "__main__":
    key = jax.random.PRNGKey(0)
    B, C, H, W = 2, 4, 16, 16
    x = jax.random.normal(key, (B, C, H, W), dtype=jnp.float32)

    ln = LayerNormPallas(C, eps=1e-6, data_format="channels_first")
    # Non-trivial (still deterministic) affine params for a stronger check.
    ln.weight = jnp.linspace(0.5, 1.5, C, dtype=jnp.float32)
    ln.bias = jnp.linspace(-0.25, 0.25, C, dtype=jnp.float32)

    out = jax.block_until_ready(ln(x))
    ref = _reference_channels_first(x, ln.weight, ln.bias, ln.eps)
    assert out.shape == (B, C, H, W)
    assert jnp.allclose(out, ref, atol=1e-5, rtol=1e-5)

    # channels_last path (same data, NHWC layout). C=4 is not a multiple of 128, so this
    # exercises the lane-dense folded path (g=32 rows folded into a 128-wide lane axis).
    x_last = jnp.transpose(x, (0, 2, 3, 1))
    ln_last = LayerNormPallas(C, eps=1e-6, data_format="channels_last")
    ln_last.weight = ln.weight
    ln_last.bias = ln.bias
    out_last = jax.block_until_ready(ln_last(x_last))
    assert jnp.allclose(out_last, jnp.transpose(ref, (0, 2, 3, 1)), atol=1e-5, rtol=1e-5)

    # bf16 channels_last smoke test: exercises dtype-aware block sizing (budget uses the
    # real 2-byte payload) while all internal math stays in f32.
    out_bf16 = jax.block_until_ready(ln_last(x_last.astype(jnp.bfloat16)))
    ref_bf16 = jnp.transpose(
        _reference_channels_first(x.astype(jnp.bfloat16).astype(jnp.float32),
                                  ln.weight, ln.bias, ln.eps),
        (0, 2, 3, 1))
    assert out_bf16.dtype == jnp.bfloat16
    assert jnp.allclose(out_bf16.astype(jnp.float32), ref_bf16, atol=5e-2, rtol=5e-2)

    print("KERNEL_OK")
</pallas_src>

<mosaic_0001>
module attributes {stable_mosaic.version = 11 : i64} {
  func.func @_ln_cf_kernel(%arg0: i32, %arg1: i32, %arg2: memref<1x4x128xf32, #tpu.memory_space<vmem>>, %arg3: memref<1x4x1xf32, #tpu.memory_space<vmem>>, %arg4: memref<1x4x1xf32, #tpu.memory_space<vmem>>, %arg5: memref<1x4x128xf32, #tpu.memory_space<vmem>>) attributes {dimension_semantics = [#tpu.dimension_semantics<parallel>, #tpu.dimension_semantics<parallel>], iteration_bounds = array<i64: 2, 2>, scalar_prefetch = 0 : i64, scratch_operands = 0 : i64, tpu.core_type = #tpu.core_type<tc>, window_params = [{transform_indices = @transform_0, window_bounds = array<i64: 1, 4, 128>}, {pipeline_mode = #tpu.pipeline_mode<synchronous>, transform_indices = @transform_1, window_bounds = array<i64: 1, 4, 1>}, {pipeline_mode = #tpu.pipeline_mode<synchronous>, transform_indices = @transform_2, window_bounds = array<i64: 1, 4, 1>}, {transform_indices = @transform_3, window_bounds = array<i64: 1, 4, 128>}]} {
    %c0 = arith.constant 0 : index
    %c0_0 = arith.constant 0 : index
    %c0_1 = arith.constant 0 : index
    %0 = vector.load %arg2[%c0, %c0_0, %c0_1] : memref<1x4x128xf32, #tpu.memory_space<vmem>>, vector<1x4x128xf32>
    %cst = arith.constant dense<0.000000e+00> : vector<1x128xf32>
    %1 = vector.multi_reduction <add>, %0, %cst [1] : vector<1x4x128xf32> to vector<1x128xf32>
    %2 = vector.shape_cast %1 : vector<1x128xf32> to vector<1x1x128xf32>
    %cst_2 = arith.constant 2.500000e-01 : f32
    %3 = vector.broadcast %cst_2 : f32 to vector<1x1x128xf32>
    %4 = arith.mulf %2, %3 : vector<1x1x128xf32>
    %5 = vector.broadcast %4 : vector<1x1x128xf32> to vector<1x4x128xf32>
    %6 = arith.subf %0, %5 : vector<1x4x128xf32>
    %7 = arith.mulf %6, %6 : vector<1x4x128xf32>
    %cst_3 = arith.constant dense<0.000000e+00> : vector<1x128xf32>
    %8 = vector.multi_reduction <add>, %7, %cst_3 [1] : vector<1x4x128xf32> to vector<1x128xf32>
    %9 = vector.shape_cast %8 : vector<1x128xf32> to vector<1x1x128xf32>
    %cst_4 = arith.constant 2.500000e-01 : f32
    %10 = vector.broadcast %cst_4 : f32 to vector<1x1x128xf32>
    %11 = arith.mulf %9, %10 : vector<1x1x128xf32>
    %cst_5 = arith.constant 9.99999997E-7 : f32
    %12 = vector.broadcast %cst_5 : f32 to vector<1x1x128xf32>
    %13 = arith.addf %11, %12 : vector<1x1x128xf32>
    %14 = math.rsqrt %13 : vector<1x1x128xf32>
    %15 = vector.broadcast %14 : vector<1x1x128xf32> to vector<1x4x128xf32>
    %16 = arith.mulf %6, %15 : vector<1x4x128xf32>
    %c0_6 = arith.constant 0 : index
    %c0_7 = arith.constant 0 : index
    %c0_8 = arith.constant 0 : index
    %17 = vector.load %arg3[%c0_6, %c0_7, %c0_8] : memref<1x4x1xf32, #tpu.memory_space<vmem>>, vector<1x4x1xf32>
    %18 = vector.broadcast %17 : vector<1x4x1xf32> to vector<1x4x128xf32>
    %19 = arith.mulf %18, %16 : vector<1x4x128xf32>
    %c0_9 = arith.constant 0 : index
    %c0_10 = arith.constant 0 : index
    %c0_11 = arith.constant 0 : index
    %20 = vector.load %arg4[%c0_9, %c0_10, %c0_11] : memref<1x4x1xf32, #tpu.memory_space<vmem>>, vector<1x4x1xf32>
    %21 = vector.broadcast %20 : vector<1x4x1xf32> to vector<1x4x128xf32>
    %22 = arith.addf %19, %21 : vector<1x4x128xf32>
    %c0_12 = arith.constant 0 : index
    %c0_13 = arith.constant 0 : index
    %c0_14 = arith.constant 0 : index
    %23 = vector.load %arg5[%c0_12, %c0_13, %c0_14] : memref<1x4x128xf32, #tpu.memory_space<vmem>>, vector<1x4x128xf32>
    tpu.vector_store %arg5[%c0_12, %c0_13, %c0_14], %22 {strides = array<i32>} : memref<1x4x128xf32, #tpu.memory_space<vmem>>, vector<1x4x128xf32>,
    return
  }
  func.func @transform_0(%arg0: i32, %arg1: i32) -> (i32, i32, i32) {
    %c0_i32 = arith.constant 0 : i32
    %c0_i32_0 = arith.constant 0 : i32
    return %arg0, %c0_i32, %arg1 : i32, i32, i32
  }
  func.func @transform_1(%arg0: i32, %arg1: i32) -> (i32, i32, i32) {
    %c0_i32 = arith.constant 0 : i32
    %c0_i32_0 = arith.constant 0 : i32
    %c0_i32_1 = arith.constant 0 : i32
    %c0_i32_2 = arith.constant 0 : i32
    return %c0_i32, %c0_i32_0, %c0_i32_1 : i32, i32, i32
  }
  func.func @transform_2(%arg0: i32, %arg1: i32) -> (i32, i32, i32) {
    %c0_i32 = arith.constant 0 : i32
    %c0_i32_0 = arith.constant 0 : i32
    %c0_i32_1 = arith.constant 0 : i32
    %c0_i32_2 = arith.constant 0 : i32
    return %c0_i32, %c0_i32_0, %c0_i32_1 : i32, i32, i32
  }
  func.func @transform_3(%arg0: i32, %arg1: i32) -> (i32, i32, i32) {
    %c0_i32 = arith.constant 0 : i32
    %c0_i32_0 = arith.constant 0 : i32
    return %arg0, %c0_i32, %arg1 : i32, i32, i32
  }
}

</mosaic_0001>

<llo_original>
// kernel: tpu_custom_call.1
$region0: #{tpu_custom_call.1}
  #allocation0 [shape = 'u32[]', space=smem, size = 0x4, offset = 0x4, fixed_abs, tag = 'smem constant byte address 0x4 - core index']
  #allocation1 [shape = 'u32[144,128]{1,0:T(1,128)}', space=vmem, size = 0x12000, scoped, tag = 'internal scratch']
  %s0 = inlined_call_operand.hbm [shape: f32[2,4,256], index: 0, kind: input, shape index: {}]
  %s1 = inlined_call_operand.vmem [shape: f32[1,4,1], index: 1, kind: input, shape index: {}]
  %s2 = inlined_call_operand.vmem [shape: f32[1,4,1], index: 2, kind: input, shape index: {}]
  %s3 = inlined_call_operand.hbm [shape: f32[2,4,256], index: 3, kind: output, shape index: {}]
  %s4 = sld [smem:[#allocation0]]
  $region49: #{tpu_custom_call.1} parent=0
    _
  %s6 = ssub.s32 1, %s4
  %s7 = scalar_select 0, %s6, %s4
  $region1: #{tpu_custom_call.1} parent=0
    #allocation2 [shape = 'u8[4096]{0}', space=vmem, size = 0x1000, scoped, tag = 'input window, operand 0']
    #allocation3 [shape = 's32[2]{0}', space=sflag, size = 0x8, scoped, tag = 'scoped memory for tpu_custom_call.1']
    #allocation4 [shape = 's32[2]{0}', space=sflag, size = 0x8, scoped, tag = 'scoped memory for tpu_custom_call.1']
    #allocation5 [shape = 'u8[4096]{0}', space=vmem, size = 0x1000, scoped, tag = 'output window, operand 0']
    %8 = vsyncpa [#allocation3], 0
    %s9 = scalar_lea.sflag [#allocation3], 1
    %10 = vsyncpa %s9, 0
    %11 = vsyncpa [#allocation4], 0
    %s12 = scalar_lea.sflag [#allocation4], 1
    %13 = vsyncpa %s12, 0
    loop: start=0, step=1, limit=6
    $region2: #{tpu_custom_call.1} parent=1 // loop_pre_header
      _
    $region3: #{tpu_custom_call.1} parent=1 // loop_header
      %s15 = sphi 0, %s19
      %p16 = scmp.ge.s32.totalorder %s15, 6
      %s22 = sphi 0, %s34
      %s23 = sphi 0, %s30
      %s24 = sphi 0, %s22
      %s25 = sphi 0, %s23
      %s26 = sphi 0, %s24
      %s27 = sphi 0, %s25
      %s39 = sphi 0, %s41
      %s42 = sphi 0, %s39
      %s43 = sphi 0, %s42
      %s59 = sphi 0, %s43
      %s63 = sphi 0, %s63
      %s65 = sphi 0, %s63
      %s66 = sphi 0, %s65
      %s80 = sphi 0, %s66
      %s84 = sphi 0, %s84
      %s86 = sphi 0, %s84
      %s87 = sphi 0, %s86
      %s101 = sphi 0, %s87
      %s109 = sphi 0, %s111
      %s112 = sphi 0, %s109
      %s113 = sphi 0, %s112
      %s129 = sphi 0, %s113
    $region4: #{tpu_custom_call.1} parent=1 // loop_header_branch
      %18 = sbr.rel (%p16) target = $region8
    $region5: #{tpu_custom_call.1} parent=1 // loop_body
      %s20 = ssub.s32 %s15, 1
      %s21 = ssub.s32 %s15, 2
      %s28 = sadd.s32 1, %s23
      %p29 = scmp.ge.s32.totalorder %s28, 2
      %s30 = scalar_select %p29, 0, %s28
      %s31 = sadd.s32 1, %s22
      %s32 = scalar_select %p29, %s31, %s22
      %p33 = scmp.ge.s32.totalorder %s32, 2
      %s34 = scalar_select %p33, 0, %s32
      %s35 = ssub.s32 %s22, %s34
      %s36 = ssub.s32 %s23, %s30
      %s37 = sor.u32 %s35, %s36
      %p38 = scmp.eq.s32.totalorder %s37, 0
      %s40 = sadd.s32 %s39, 1
      %s41 = scalar_select %p38, %s39, %s40
      %p44 = pneg %p38
      %p45 = scmp.eq.s32.totalorder %s15, 3
      %p46 = por %p44, %p45
      %p47 = scmp.ne.s32.totalorder %s39, %s42
      %p48 = scmp.eq.s32.totalorder %s15, 0
      %p49 = por %p47, %p48
      %p50 = scmp.ne.s32.totalorder %s39, %s42
      %p51 = scmp.eq.s32.totalorder %s20, 3
      %p52 = por %p50, %p51
      %p53 = scmp.ne.s32.totalorder %s42, %s43
      %p54 = scmp.eq.s32.totalorder %s20, 0
      %p55 = por %p53, %p54
      %p56 = scmp.ne.s32.totalorder %s42, %s43
      %p57 = scmp.eq.s32.totalorder %s21, 3
      %p58 = por %p56, %p57
      %p60 = scmp.ne.s32.totalorder %s43, %s59
      %p61 = scmp.eq.s32.totalorder %s21, 0
      %p62 = por %p60, %p61
      %s64 = sadd.s32 %s63, 1
      %p67 = scmp.eq.s32.totalorder %s15, 3
      %p68 = scmp.ne.s32.totalorder %s63, %s65
      %p69 = scmp.eq.s32.totalorder %s15, 0
      %p70 = por %p68, %p69
      %p71 = scmp.ne.s32.totalorder %s63, %s65
      %p72 = scmp.eq.s32.totalorder %s20, 3
      %p73 = por %p71, %p72
      %p74 = scmp.ne.s32.totalorder %s65, %s66
      %p75 = scmp.eq.s32.totalorder %s20, 0
      %p76 = por %p74, %p75
      %p77 = scmp.ne.s32.totalorder %s65, %s66
      %p78 = scmp.eq.s32.totalorder %s21, 3
      %p79 = por %p77, %p78
      %p81 = scmp.ne.s32.totalorder %s66, %s80
      %p82 = scmp.eq.s32.totalorder %s21, 0
      %p83 = por %p81, %p82
      %s85 = sadd.s32 %s84, 1
      %p88 = scmp.eq.s32.totalorder %s15, 3
      %p89 = scmp.ne.s32.totalorder %s84, %s86
      %p90 = scmp.eq.s32.totalorder %s15, 0
      %p91 = por %p89, %p90
      %p92 = scmp.ne.s32.totalorder %s84, %s86
      %p93 = scmp.eq.s32.totalorder %s20, 3
      %p94 = por %p92, %p93
      %p95 = scmp.ne.s32.totalorder %s86, %s87
      %p96 = scmp.eq.s32.totalorder %s20, 0
      %p97 = por %p95, %p96
      %p98 = scmp.ne.s32.totalorder %s86, %s87
      %p99 = scmp.eq.s32.totalorder %s21, 3
      %p100 = por %p98, %p99
      %p102 = scmp.ne.s32.totalorder %s87, %s101
      %p103 = scmp.eq.s32.totalorder %s21, 0
      %p104 = por %p102, %p103
      %s105 = ssub.s32 %s22, %s34
      %s106 = ssub.s32 %s23, %s30
      %s107 = sor.u32 %s105, %s106
      %p108 = scmp.eq.s32.totalorder %s107, 0
      %s110 = sadd.s32 %s109, 1
      %s111 = scalar_select %p108, %s109, %s110
      %p114 = pneg %p108
      %p115 = scmp.eq.s32.totalorder %s15, 3
      %p116 = por %p114, %p115
      %p117 = scmp.ne.s32.totalorder %s109, %s112
      %p118 = scmp.eq.s32.totalorder %s15, 0
      %p119 = por %p117, %p118
      %p120 = scmp.ne.s32.totalorder %s109, %s112
      %p121 = scmp.eq.s32.totalorder %s20, 3
      %p122 = por %p120, %p121
      %p123 = scmp.ne.s32.totalorder %s112, %s113
      %p124 = scmp.eq.s32.totalorder %s20, 0
      %p125 = por %p123, %p124
      %p126 = scmp.ne.s32.totalorder %s112, %s113
      %p127 = scmp.eq.s32.totalorder %s21, 3
      %p128 = por %p126, %p127
      %p130 = scmp.ne.s32.totalorder %s113, %s129
      %p131 = scmp.eq.s32.totalorder %s21, 0
      %p132 = por %p130, %p131
      %p133 = scmp.le.s32.totalorder 1, %s15
      %p134 = scmp.lt.s32.totalorder %s15, 5
      %p135 = pnand %p133, %p134
      %p136 = pneg %p135
      // Predicated region
      $region9: #{tpu_custom_call.1} parent=5 // pred_check
        _
      $region10: #{tpu_custom_call.1} parent=5 // pred_check_branch
        %138 = sbr.rel (%p135) target = $region12
      $region11: #{tpu_custom_call.1} parent=5 // pred_region
        %s139 = ssub.s32 %s15, 1
        // Predicated region
        $region13: #{tpu_custom_call.1} parent=11 // pred_check
          %p140 = pneg %p76
        $region14: #{tpu_custom_call.1} parent=11 // pred_check_branch
          %142 = sbr.rel (%p140) target = $region16
        $region15: #{tpu_custom_call.1} parent=11 // pred_region
          _
        $region16: #{tpu_custom_call.1} parent=11 // pred_fallthru
          _
        // Predicated region
        $region17: #{tpu_custom_call.1} parent=11 // pred_check
          %p143 = pneg %p97
        $region18: #{tpu_custom_call.1} parent=11 // pred_check_branch
          %145 = sbr.rel (%p143) target = $region20
        $region19: #{tpu_custom_call.1} parent=11 // pred_region
          _
        $region20: #{tpu_custom_call.1} parent=11 // pred_fallthru
          _
      $region12: #{tpu_custom_call.1} parent=5 // pred_fallthru
        _
      %p146 = scmp.lt.s32.totalorder %s15, 4
      // Predicated region
      $region21: #{tpu_custom_call.1} parent=5 // pred_check
        %p147 = pneg %p146
      $region22: #{tpu_custom_call.1} parent=5 // pred_check_branch
        %149 = sbr.rel (%p147) target = $region24
      $region23: #{tpu_custom_call.1} parent=5 // pred_region
        // Predicated region
        $region25: #{tpu_custom_call.1} parent=23 // pred_check
          %p150 = pneg %p49
        $region26: #{tpu_custom_call.1} parent=23 // pred_check_branch
          %152 = sbr.rel (%p150) target = $region28
        $region27: #{tpu_custom_call.1} parent=23 // pred_region
          %s153 = sand.u32 %s39, 1
          %s154 = scalar_lea.sflag [#allocation3], %s153
          %s155 = sand.u32 %s39, 1
          %s156 = smul.addr %s155, 4
          %s157 = scalar_lea.vmem [#allocation2], %s156
          %s159 = ssub.s32 64, 64
          %160 = vsyncadd %s154, %s159
          %s161 = smul.addr %s22, 2
          %s162 = sadd.s32 %s23, %s161
          %s163 = smul.addr %s162, 64
          %s164 = scalar_lea.hbm %s0, %s163
          %s166 = sshll.u32 %s157, 4
          %s167 = int_to_ptr.vmem [resolvable:$true] %s166
          %169 = dma.hbm_to_vmem [thread:$0]  %s164, 64, %s167, %s154
        $region28: #{tpu_custom_call.1} parent=23 // pred_fallthru
          _
      $region24: #{tpu_custom_call.1} parent=5 // pred_fallthru
        _
      %p170 = scmp.le.s32.totalorder 1, %s15
      %p171 = scmp.lt.s32.totalorder %s15, 5
      %p172 = pnand %p170, %p171
      %p173 = pneg %p172
      // Predicated region
      $region29: #{tpu_custom_call.1} parent=5 // pred_check
        _
      $region30: #{tpu_custom_call.1} parent=5 // pred_check_branch
        %175 = sbr.rel (%p172) target = $region32
      $region31: #{tpu_custom_call.1} parent=5 // pred_region
        %s176 = ssub.s32 %s15, 1
        %s177 = sand.u32 %s42, 1
        %s178 = scalar_lea.sflag [#allocation3], %s177
        %s179 = sand.u32 %s42, 1
        %s180 = smul.addr %s179, 4
        %s181 = scalar_lea.vmem [#allocation2], %s180
        // Predicated region
        $region33: #{tpu_custom_call.1} parent=31 // pred_check
          %p182 = pneg %p55
        $region34: #{tpu_custom_call.1} parent=31 // pred_check_branch
          %184 = sbr.rel (%p182) target = $region36
        $region35: #{tpu_custom_call.1} parent=31 // pred_region
          %185 = dma.done %s178, 64
        $region36: #{tpu_custom_call.1} parent=31 // pred_fallthru
          _
        %s186 = sand.u32 %s42, 1
        %s187 = scalar_lea.sflag [#allocation3], %s186
        %s188 = sand.u32 %s42, 1
        %s189 = smul.addr %s188, 4
        %s190 = scalar_lea.vmem [#allocation2], %s189
        %p191 = pneg %p55
        %p192 = pneg %p52
        %p193 = pneg %p76
        %p194 = pneg %p73
        %p195 = pneg %p97
        %p196 = pneg %p94
        %p197 = pneg %p125
        %p198 = pneg %p122
        %s199 = sand.u32 %s112, 1
        %s200 = scalar_lea.sflag [#allocation4], %s199
        %s201 = sand.u32 %s112, 1
        %s202 = smul.addr %s201, 4
        %s203 = scalar_lea.vmem [#allocation5], %s202
        %v204 = vld [vmem:[%s181] sm:$0xf]
        %vm205 = vcmask 1043456
        %v206 = vsel %vm205, %v204, 0.0
        %v207 = vrot.slane %v206, 4
        %v208 = vadd.f32 %v206, %v207
        %v209 = vrot.slane %v208, 2
        %v210 = vadd.f32 %v208, %v209
        %v211 = vrot.slane %v210, 1
        %v212 = vadd.f32 %v210, %v211
        %v213 = vmul.f32 %v212, 0.25
        %v214 = vsub.f32 %v204, %v213
        %v215 = vmul.f32 %v214, %v214
        %v216 = vsel %vm205, %v215, 0.0
        %v217 = vrot.slane %v216, 4
        %v218 = vadd.f32 %v216, %v217
        %v219 = vrot.slane %v218, 2
        %v220 = vadd.f32 %v218, %v219
        %v221 = vrot.slane %v220, 1
        %v222 = vadd.f32 %v220, %v221
        %v223 = vmul.f32 %v222, 0.25
        %v224 = vadd.f32 %v223, 1e-06
        %v225 = vrsqrt.pop %v224
        %v226 = vmul.f32 %v214, %v225
        %v227 = vld [vmem:[%s1] sm:$0xf]
        %229 = vset.pattern.permute.xlu0 0
        %230 = vperm.xlu0 %229, %v227
        %v231 = vpop.permute.xlu0 %230
        %v233 = vmul.f32 %v231, %v226
        %v234 = vld [vmem:[%s2] sm:$0xf]
        %236 = vset.pattern.permute.xlu0 0
        %237 = vperm.xlu0 %236, %v234
        %v238 = vpop.permute.xlu0 %237
        %v240 = vadd.f32 %v233, %v238
        %241 = vst [vmem:[%s203] sm:$0xf] %v240
        %s242 = sand.u32 %s112, 1
        %s243 = scalar_lea.sflag [#allocation4], %s242
        %s244 = sand.u32 %s112, 1
        %s245 = smul.addr %s244, 4
        %s246 = scalar_lea.vmem [#allocation5], %s245
        // Predicated region
        $region37: #{tpu_custom_call.1} parent=31 // pred_check
          %p247 = pneg %p122
        $region38: #{tpu_custom_call.1} parent=31 // pred_check_branch
          %249 = sbr.rel (%p247) target = $region40
        $region39: #{tpu_custom_call.1} parent=31 // pred_region
          %s251 = ssub.s32 64, 64
          %252 = vsyncadd %s243, %s251
          %s253 = smul.addr %s24, 2
          %s254 = sadd.s32 %s25, %s253
          %s255 = smul.addr %s254, 64
          %s256 = scalar_lea.hbm %s3, %s255
          %s258 = sshll.u32 %s246, 4
          %s259 = int_to_ptr.vmem [resolvable:$true] %s258
          %261 = dma.vmem_to_hbm [thread:$0]  %s259, 64, %s256, %s243
        $region40: #{tpu_custom_call.1} parent=31 // pred_fallthru
          _
      $region32: #{tpu_custom_call.1} parent=5 // pred_fallthru
        _
      %p262 = scmp.le.s32.totalorder 2, %s15
      // Predicated region
      $region41: #{tpu_custom_call.1} parent=5 // pred_check
        %p263 = pneg %p262
      $region42: #{tpu_custom_call.1} parent=5 // pred_check_branch
        %265 = sbr.rel (%p263) target = $region44
      $region43: #{tpu_custom_call.1} parent=5 // pred_region
        %s266 = ssub.s32 %s15, 2
        // Predicated region
        $region45: #{tpu_custom_call.1} parent=43 // pred_check
          %p267 = pneg %p128
        $region46: #{tpu_custom_call.1} parent=43 // pred_check_branch
          %269 = sbr.rel (%p267) target = $region48
        $region47: #{tpu_custom_call.1} parent=43 // pred_region
          %s270 = sand.u32 %s113, 1
          %s271 = scalar_lea.sflag [#allocation4], %s270
          %s272 = sand.u32 %s113, 1
          %s273 = smul.addr %s272, 4
          %s274 = scalar_lea.vmem [#allocation5], %s273
          %275 = dma.done %s271, 64
        $region48: #{tpu_custom_call.1} parent=43 // pred_fallthru
          _
      $region44: #{tpu_custom_call.1} parent=5 // pred_fallthru
        _
    $region6: #{tpu_custom_call.1} parent=1 // loop_footer
      %s19 = sadd.s32 1, %s15
    $region7: #{tpu_custom_call.1} parent=1 // loop_footer_branch
      %14 = sbr.rel target = $region3
    $region8: #{tpu_custom_call.1} parent=1 // loop_exit
      _
    %276 = vsyncpa [#allocation3], 1
    %s277 = scalar_lea.sflag [#allocation3], 1
    %278 = vsyncpa %s277, 1
    %279 = vsyncpa [#allocation4], 1
    %s280 = scalar_lea.sflag [#allocation4], 1
    %281 = vsyncpa %s280, 1

</llo_original>
